<compile_context>
chip_gen: v7x
topology: tpu7x:2x2x1
jax: 0.10.0
libtpu: 0.0.40
codegen_flags: <defaults>
</compile_context>

<pallas_src>
import jax
import jax.numpy as jnp
from jax.experimental import pallas as pl
from jax.experimental.pallas import tpu as pltpu


def _round_up(x, m):
    return ((x + m - 1) // m) * m


def gs_normal_loss(normals, depth_normals, *, weight=0.001, edge_aware=False):
    """normals / depth_normals: (B, n_pixels, 3) per-render normal maps."""
    if weight <= 0:
        return {"gs_normal_loss": jnp.float32(0.0)}
    if edge_aware:
        # TODO(synk): edge-aware weighting needs target RGBs + an image
        # gradient-magnitude pass; keep that path in plain JAX if ever needed.
        raise NotImplementedError("edge_aware GSNormalLoss is not implemented")

    B, n_pixels, C = normals.shape
    L = n_pixels * C

    # Flatten channel into the lane axis (free: contiguous-dim collapse).
    n2 = normals.reshape(B, L)
    dn2 = depth_normals.reshape(B, L)

    # --- lane (reduction) tiling -------------------------------------------
    LANE_CAP = 16384                       # lane elements per block
    if L <= LANE_CAP:
        Lt = L
        if L % 128 != 0:
            # Small non-128-multiple L: pad a few lanes with zeros (exact:
            # zero products add nothing to the sum). Negligible traffic.
            Lt = _round_up(L, 128)
            n2 = jnp.pad(n2, ((0, 0), (0, Lt - L)))
            dn2 = jnp.pad(dn2, ((0, 0), (0, Lt - L)))
    else:
        Lt = LANE_CAP                      # multiple of 128
    L_arr = n2.shape[1]                    # actual lane length of the arrays
    nl = pl.cdiv(L_arr, Lt)
    ragged_tail = (L_arr % Lt) != 0        # only possible when L > LANE_CAP
    n_chunks = Lt // 128

    # --- render (parallel) tiling ------------------------------------------
    if B <= 8:
        Bt = B                             # block dim == full array dim: OK
    elif B % 8 == 0:
        Bt = 8
        for cand in (16, 32):
            if B % cand == 0:
                Bt = cand
    else:
        # Ragged last render block: OOB rows read garbage, but their output
        # rows are discarded by the wrapper slice below.
        Bt = 8
    nb = pl.cdiv(B, Bt)

    def kernel(n_ref, dn_ref, o_ref):
        li = pl.program_id(1)

        @pl.when(li == 0)
        def _():
            o_ref[...] = jnp.zeros_like(o_ref)

        prod = n_ref[...].astype(jnp.float32) * dn_ref[...].astype(jnp.float32)

        if ragged_tail:
            lane = jax.lax.broadcasted_iota(jnp.int32, prod.shape, 1)
            prod = jnp.where(li * Lt + lane < L_arr, prod, 0.0)

        # Pure-VPU lane-block accumulation: static 128-lane slices (zero-cost
        # views on 128-lane boundaries), summed into the resident (Bt, 128)
        # output block. The kernel is HBM-bound, so these adds are free filler.
        acc = prod[:, 0:128]
        for k in range(1, n_chunks):
            acc = acc + prod[:, k * 128:(k + 1) * 128]
        o_ref[...] += acc

    out = pl.pallas_call(
        kernel,
        out_shape=jax.ShapeDtypeStruct((nb * Bt, 128), jnp.float32),
        grid_spec=pltpu.PrefetchScalarGridSpec(
            num_scalar_prefetch=0,
            grid=(nb, nl),                 # (render blocks, lane reduction)
            in_specs=[
                pl.BlockSpec((Bt, Lt), lambda bi, li: (bi, li)),
                pl.BlockSpec((Bt, Lt), lambda bi, li: (bi, li)),
            ],
            out_specs=pl.BlockSpec((Bt, 128), lambda bi, li: (bi, 0)),
        ),
        compiler_params=pltpu.CompilerParams(
            dimension_semantics=("parallel", "arbitrary"),
        ),
    )(n2, dn2)

    per_render_dot_sum = out[:B].sum(axis=1)         # final 128-wide reduce
    per_render_loss = 1.0 - per_render_dot_sum / jnp.float32(n_pixels)
    final_loss = jnp.mean(per_render_loss)
    return {"gs_normal_loss": jnp.float32(weight) * final_loss}


def _reference(normals, depth_normals, *, weight=0.001):
    """Pure-JAX mirror of GSNormalLoss.forward (edge_aware=False)."""
    B = normals.shape[0]
    losses = []
    for b in range(B):
        nl = 1.0 - jnp.sum(depth_normals[b] * normals[b], axis=-1)
        losses.append(nl.mean())
    return jnp.float32(weight) * (sum(losses) / len(losses))


if __name__ == "__main__":
    B = 2                      # two renders
    H = W = 16                 # spatial resolution -> n_pixels = 256
    n_pixels = H * W
    weight = 0.001

    key = jax.random.PRNGKey(0)
    k_n, k_d = jax.random.split(key)

    def _unit(v):
        return v / jnp.linalg.norm(v, axis=-1, keepdims=True)

    normals = _unit(jax.random.normal(k_n, (B, n_pixels, 3), jnp.float32))
    depth_normals = _unit(normals + 0.1 * jax.random.normal(k_d, (B, n_pixels, 3), jnp.float32))

    out = gs_normal_loss(normals, depth_normals, weight=weight)
    val = jax.block_until_ready(out["gs_normal_loss"])

    ref = _reference(normals, depth_normals, weight=weight)
    assert jnp.allclose(val, ref, rtol=1e-5, atol=1e-6), (val, ref)

    print("KERNEL_OK")
</pallas_src>

<mosaic_0001>
module attributes {stable_mosaic.version = 11 : i64} {
  func.func @kernel(%arg0: i32, %arg1: i32, %arg2: memref<2x768xf32, #tpu.memory_space<vmem>>, %arg3: memref<2x768xf32, #tpu.memory_space<vmem>>, %arg4: memref<2x128xf32, #tpu.memory_space<vmem>>) attributes {dimension_semantics = [#tpu.dimension_semantics<parallel>, #tpu.dimension_semantics<arbitrary>], iteration_bounds = array<i64: 1, 1>, scalar_prefetch = 0 : i64, scratch_operands = 0 : i64, tpu.core_type = #tpu.core_type<tc>, window_params = [{transform_indices = @transform_0, window_bounds = array<i64: 2, 768>}, {transform_indices = @transform_1, window_bounds = array<i64: 2, 768>}, {transform_indices = @transform_2, window_bounds = array<i64: 2, 128>}]} {
    %c0_i32 = arith.constant 0 : i32
    %0 = arith.cmpi eq, %arg1, %c0_i32 : i32
    %1 = arith.extui %0 : i1 to i32
    %c0_i32_0 = arith.constant 0 : i32
    %2 = arith.cmpi ne, %1, %c0_i32_0 : i32
    scf.if %2 {
      %cst = arith.constant 0.000000e+00 : f32
      %20 = vector.broadcast %cst : f32 to vector<2x128xf32>
      %c0_8 = arith.constant 0 : index
      %c0_9 = arith.constant 0 : index
      %21 = vector.load %arg4[%c0_8, %c0_9] : memref<2x128xf32, #tpu.memory_space<vmem>>, vector<2x128xf32>
      tpu.vector_store %arg4[%c0_8, %c0_9], %20 {strides = array<i32>} : memref<2x128xf32, #tpu.memory_space<vmem>>, vector<2x128xf32>,
    } else {
    }
    %c0 = arith.constant 0 : index
    %c0_1 = arith.constant 0 : index
    %3 = vector.load %arg2[%c0, %c0_1] : memref<2x768xf32, #tpu.memory_space<vmem>>, vector<2x768xf32>
    %c0_2 = arith.constant 0 : index
    %c0_3 = arith.constant 0 : index
    %4 = vector.load %arg3[%c0_2, %c0_3] : memref<2x768xf32, #tpu.memory_space<vmem>>, vector<2x768xf32>
    %5 = arith.mulf %3, %4 : vector<2x768xf32>
    %6 = vector.extract_strided_slice %5 {offsets = [0, 0], sizes = [2, 128], strides = [1, 1]} : vector<2x768xf32> to vector<2x128xf32>
    %7 = vector.extract_strided_slice %5 {offsets = [0, 128], sizes = [2, 128], strides = [1, 1]} : vector<2x768xf32> to vector<2x128xf32>
    %8 = arith.addf %6, %7 : vector<2x128xf32>
    %9 = vector.extract_strided_slice %5 {offsets = [0, 256], sizes = [2, 128], strides = [1, 1]} : vector<2x768xf32> to vector<2x128xf32>
    %10 = arith.addf %8, %9 : vector<2x128xf32>
    %11 = vector.extract_strided_slice %5 {offsets = [0, 384], sizes = [2, 128], strides = [1, 1]} : vector<2x768xf32> to vector<2x128xf32>
    %12 = arith.addf %10, %11 : vector<2x128xf32>
    %13 = vector.extract_strided_slice %5 {offsets = [0, 512], sizes = [2, 128], strides = [1, 1]} : vector<2x768xf32> to vector<2x128xf32>
    %14 = arith.addf %12, %13 : vector<2x128xf32>
    %15 = vector.extract_strided_slice %5 {offsets = [0, 640], sizes = [2, 128], strides = [1, 1]} : vector<2x768xf32> to vector<2x128xf32>
    %16 = arith.addf %14, %15 : vector<2x128xf32>
    %c0_4 = arith.constant 0 : index
    %c0_5 = arith.constant 0 : index
    %17 = vector.load %arg4[%c0_4, %c0_5] : memref<2x128xf32, #tpu.memory_space<vmem>>, vector<2x128xf32>
    %18 = arith.addf %17, %16 : vector<2x128xf32>
    %c0_6 = arith.constant 0 : index
    %c0_7 = arith.constant 0 : index
    %19 = vector.load %arg4[%c0_6, %c0_7] : memref<2x128xf32, #tpu.memory_space<vmem>>, vector<2x128xf32>
    tpu.vector_store %arg4[%c0_6, %c0_7], %18 {strides = array<i32>} : memref<2x128xf32, #tpu.memory_space<vmem>>, vector<2x128xf32>,
    return
  }
  func.func @transform_0(%arg0: i32, %arg1: i32) -> (i32, i32) {
    %c0_i32 = arith.constant 0 : i32
    return %arg0, %arg1 : i32, i32
  }
  func.func @transform_1(%arg0: i32, %arg1: i32) -> (i32, i32) {
    %c0_i32 = arith.constant 0 : i32
    return %arg0, %arg1 : i32, i32
  }
  func.func @transform_2(%arg0: i32, %arg1: i32) -> (i32, i32) {
    %c0_i32 = arith.constant 0 : i32
    %c0_i32_0 = arith.constant 0 : i32
    return %arg0, %c0_i32 : i32, i32
  }
}

</mosaic_0001>

<llo_original>
// kernel: tpu_custom_call.1
$region0: #{tpu_custom_call.1}
  #allocation0 [shape = 'u32[]', space=smem, size = 0x4, offset = 0x4, fixed_abs, tag = 'smem constant byte address 0x4 - core index']
  #allocation1 [shape = 'u32[144,128]{1,0:T(1,128)}', space=vmem, size = 0x12000, scoped, tag = 'internal scratch']
  %s0 = inlined_call_operand.hbm [shape: f32[2,768], index: 0, kind: input, shape index: {}]
  %s1 = inlined_call_operand.hbm [shape: f32[2,768], index: 1, kind: input, shape index: {}]
  %s2 = inlined_call_operand.hbm [shape: f32[2,128], index: 2, kind: output, shape index: {}]
  %s3 = sld [smem:[#allocation0]]
  $region30: #{tpu_custom_call.1} parent=0
    _
  %s5 = ssub.s32 1, %s3
  %s6 = scalar_select 0, %s5, %s3
  $region1: #{tpu_custom_call.1} parent=0
    #allocation2 [shape = 'u8[6144]{0}', space=vmem, size = 0x1800, scoped, tag = 'input window, operand 0, single buffered']
    #allocation3 [shape = 's32[1]{0}', space=sflag, size = 0x4, scoped, tag = 'scoped memory for tpu_custom_call.1']
    #allocation4 [shape = 's32[1]{0}', space=sflag, size = 0x4, scoped, tag = 'scoped memory for tpu_custom_call.1']
    #allocation5 [shape = 'u8[6144]{0}', space=vmem, size = 0x1800, scoped, tag = 'input window, operand 1, single buffered']
    #allocation6 [shape = 's32[1]{0}', space=sflag, size = 0x4, scoped, tag = 'scoped memory for tpu_custom_call.1']
    #allocation7 [shape = 'u8[1024]{0}', space=vmem, size = 0x400, scoped, tag = 'output window, operand 0, single buffered']
    %7 = vsyncpa [#allocation3], 0
    %8 = vsyncpa [#allocation6], 0
    %9 = vsyncpa [#allocation4], 0
    // Predicated region
    $region2: #{tpu_custom_call.1} parent=1 // pred_check
      _
    $region3: #{tpu_custom_call.1} parent=1 // pred_check_branch
      %11 = sbr.rel (0) target = $region5
    $region4: #{tpu_custom_call.1} parent=1 // pred_region
      %s13 = ssub.s32 192, 192
      %14 = vsyncadd [#allocation3], %s13
      %s16 = sshll.u32 [#allocation2], 4
      %s17 = int_to_ptr.vmem [resolvable:$true] %s16
      %19 = dma.hbm_to_vmem [thread:$0]  %s0, 192, %s17, [#allocation3]
    $region5: #{tpu_custom_call.1} parent=1 // pred_fallthru
      _
    // Predicated region
    $region6: #{tpu_custom_call.1} parent=1 // pred_check
      _
    $region7: #{tpu_custom_call.1} parent=1 // pred_check_branch
      %21 = sbr.rel (0) target = $region9
    $region8: #{tpu_custom_call.1} parent=1 // pred_region
      %s23 = ssub.s32 192, 192
      %24 = vsyncadd [#allocation6], %s23
      %s26 = sshll.u32 [#allocation5], 4
      %s27 = int_to_ptr.vmem [resolvable:$true] %s26
      %29 = dma.hbm_to_vmem [thread:$0]  %s1, 192, %s27, [#allocation6]
    $region9: #{tpu_custom_call.1} parent=1 // pred_fallthru
      _
    // Predicated region
    $region10: #{tpu_custom_call.1} parent=1 // pred_check
      _
    $region11: #{tpu_custom_call.1} parent=1 // pred_check_branch
      %31 = sbr.rel (0) target = $region13
    $region12: #{tpu_custom_call.1} parent=1 // pred_region
      %32 = dma.done [#allocation3], 192
    $region13: #{tpu_custom_call.1} parent=1 // pred_fallthru
      _
    // Predicated region
    $region14: #{tpu_custom_call.1} parent=1 // pred_check
      _
    $region15: #{tpu_custom_call.1} parent=1 // pred_check_branch
      %34 = sbr.rel (0) target = $region17
    $region16: #{tpu_custom_call.1} parent=1 // pred_region
      %35 = dma.done [#allocation6], 192
    $region17: #{tpu_custom_call.1} parent=1 // pred_fallthru
      _
    %p36 = scmp.eq.s32.totalorder 0, 0
    // Predicated region
    $region18: #{tpu_custom_call.1} parent=1 // pred_check
      %p37 = pneg %p36
    $region19: #{tpu_custom_call.1} parent=1 // pred_check_branch
      %39 = sbr.rel (%p37) target = $region21
    $region20: #{tpu_custom_call.1} parent=1 // pred_region
      %40 = vst [vmem:[#allocation7] sm:$0x3] 0.0
    $region21: #{tpu_custom_call.1} parent=1 // pred_fallthru
      _
    %v41 = vld [vmem:[#allocation2] sm:$0xff]
    %v42 = vld [vmem:[#allocation2 + $0x8] sm:$0xf]
    %v43 = vld [vmem:[#allocation5] sm:$0xff]
    %v44 = vld [vmem:[#allocation5 + $0x8] sm:$0xf]
    %v45 = vmul.f32 %v41, %v43
    %v46 = vmul.f32 %v42, %v44
    %v48 = vrot.slane %v45, 2
    %v50 = vadd.f32 %v45, %v48
    %v51 = vrot.slane %v45, 4
    %v53 = vadd.f32 %v50, %v51
    %v54 = vrot.slane %v45, 6
    %v56 = vadd.f32 %v53, %v54
    %v57 = vadd.f32 %v56, %v46
    %v59 = vrot.slane %v46, 2
    %v61 = vadd.f32 %v57, %v59
    %v62 = vld [vmem:[#allocation7] sm:$0x3]
    %v63 = vadd.f32 %v62, %v61
    %64 = vst [vmem:[#allocation7] sm:$0x3] %v63
    // Predicated region
    $region22: #{tpu_custom_call.1} parent=1 // pred_check
      _
    $region23: #{tpu_custom_call.1} parent=1 // pred_check_branch
      %66 = sbr.rel (0) target = $region25
    $region24: #{tpu_custom_call.1} parent=1 // pred_region
      %s68 = ssub.s32 32, 32
      %69 = vsyncadd [#allocation4], %s68
      %s71 = sshll.u32 [#allocation7], 4
      %s72 = int_to_ptr.vmem [resolvable:$true] %s71
      %74 = dma.vmem_to_hbm [thread:$0]  %s72, 32, %s2, [#allocation4]
    $region25: #{tpu_custom_call.1} parent=1 // pred_fallthru
      _
    // Predicated region
    $region26: #{tpu_custom_call.1} parent=1 // pred_check
      _
    $region27: #{tpu_custom_call.1} parent=1 // pred_check_branch
      %76 = sbr.rel (0) target = $region29
    $region28: #{tpu_custom_call.1} parent=1 // pred_region
      %77 = dma.done [#allocation4], 32
    $region29: #{tpu_custom_call.1} parent=1 // pred_fallthru
      _
    %78 = vsyncpa [#allocation3], 1
    %79 = vsyncpa [#allocation6], 1
    %80 = vsyncpa [#allocation4], 1

</llo_original>
